<compile_context>
chip_gen: v5e
topology: v5e:2x2
jax: 0.10.0
libtpu: 0.0.40
codegen_flags: <defaults>
</compile_context>

<pallas_src>
import functools

import jax
import jax.numpy as jnp
from jax.experimental import pallas as pl
from jax.experimental.pallas import tpu as pltpu


def _focal_loss_kernel(logits_ref, targets_ref, out_ref, *, gamma, alpha,
                       n_total, tile_n):
    i = pl.program_id(0)

    # Zero the resident (1,1) accumulator on the first grid step.
    @pl.when(i == 0)
    def _init():
        out_ref[...] = jnp.zeros_like(out_ref)

    # Upcast in-kernel (bf16/fp16 inputs travel over HBM at native width).
    x = logits_ref[...].astype(jnp.float32)          # (tile_n, C)
    tgt = targets_ref[...]                           # (tile_n, 1) int32
    tn, c = x.shape

    # Numerically-stable row-wise log-sum-exp.
    m = jnp.max(x, axis=-1, keepdims=True)                               # (tn, 1)
    lse = m + jnp.log(jnp.sum(jnp.exp(x - m), axis=-1, keepdims=True))   # (tn, 1)

    # Gather the target-class logit via select + reduce (no dynamic gather on TPU,
    # no onehot float conversion / extra multiply).
    class_ids = jax.lax.broadcasted_iota(jnp.int32, (tn, c), 1)
    tgt_logit = jnp.sum(jnp.where(class_ids == tgt, x, 0.0),
                        axis=-1, keepdims=True)                          # (tn, 1)

    nll = lse - tgt_logit                                                # (tn, 1)

    # Mask rows past the true batch size (padded last tile).
    row_ids = i * tile_n + jax.lax.broadcasted_iota(jnp.int32, (tn, 1), 0)
    nll = jnp.where(row_ids < n_total, nll, 0.0)

    # Accumulate raw NLL sum across tiles.
    out_ref[...] += jnp.sum(nll, axis=0, keepdims=True)                  # (1, 1)

    # Finalize: mean CE over the true N, then focal modulation (once).
    @pl.when(i == pl.num_programs(0) - 1)
    def _finalize():
        logp = out_ref[...] / jnp.float32(n_total)       # (1,1) mean cross-entropy
        p = jnp.exp(-logp)
        one_m_p = 1.0 - p
        if gamma == 2:                                   # integer gamma: keep as mul
            mod = one_m_p * one_m_p
        else:
            mod = one_m_p ** gamma
        out_ref[...] = jnp.float32(alpha) * mod * logp


def _choose_tile_n(n, c, itemsize):
    """Largest batch tile keeping one double-buffered logits block ~<= 8 MiB,
    safe within the scoped VMEM default on v5e/v6e/v7x."""
    per_buffer_budget = 4 * 1024 * 1024                  # x2 for double buffering
    rows = per_buffer_budget // max(1, c * itemsize)
    rows = max(8, min(2048, (rows // 8) * 8))            # sublane-aligned
    if rows >= n:
        return n                                          # block == full dim is legal
    return rows


def focal_loss(logits, targets, *, gamma=2, alpha=0.25, tile_n=None):
    """logits: (N, C) float32/bfloat16, targets: (N,) int class ids -> scalar f32."""
    n, c = logits.shape
    itemsize = jnp.dtype(logits.dtype).itemsize
    targets_2d = targets.reshape(n, 1).astype(jnp.int32)

    if tile_n is None:
        tile_n = _choose_tile_n(n, c, itemsize)
    num_tiles = pl.cdiv(n, tile_n)

    kernel = functools.partial(_focal_loss_kernel, gamma=gamma, alpha=alpha,
                               n_total=n, tile_n=tile_n)

    cost = pl.CostEstimate(
        flops=6 * n * c,
        transcendentals=n * c + 2 * n,
        bytes_accessed=n * c * itemsize + n * 4 + 4,
    )

    # NOTE: the single grid axis is a pure reduction ("arbitrary"); a v7x megacore
    # split (leading "parallel" core axis producing per-core partial sums combined
    # in the wrapper) is a further optional optimization.
    out = pl.pallas_call(
        kernel,
        out_shape=jax.ShapeDtypeStruct((1, 1), jnp.float32),
        grid_spec=pltpu.PrefetchScalarGridSpec(
            num_scalar_prefetch=0,
            grid=(num_tiles,),
            in_specs=[
                pl.BlockSpec((tile_n, c), lambda i: (i, 0)),   # logits tile
                pl.BlockSpec((tile_n, 1), lambda i: (i, 0)),   # per-row targets
            ],
            out_specs=pl.BlockSpec((1, 1), lambda i: (0, 0)),  # resident accumulator
        ),
        compiler_params=pltpu.CompilerParams(
            dimension_semantics=("arbitrary",)),
        cost_estimate=cost,
    )(logits, targets_2d)
    return out[0, 0]


def _focal_loss_ref(logits, targets, *, gamma=2, alpha=0.25):
    # Pure-JAX reference for sanity checking.
    logits = logits.astype(jnp.float32)
    logz = jax.nn.logsumexp(logits, axis=-1)
    tgt_logit = jnp.take_along_axis(logits, targets[:, None], axis=-1)[:, 0]
    logp = jnp.mean(logz - tgt_logit)
    p = jnp.exp(-logp)
    return alpha * (1.0 - p) ** gamma * logp


if __name__ == "__main__":
    key = jax.random.PRNGKey(0)
    k1, k2 = jax.random.split(key)
    N, C = 20, 32  # small batch, 32 classes; N chosen to NOT divide the test tile
    logits = jax.random.normal(k1, (N, C), dtype=jnp.float32)
    targets = jax.random.randint(k2, (N,), 0, C, dtype=jnp.int32)

    ref = _focal_loss_ref(logits, targets, gamma=2, alpha=0.25)

    # 1) default tiling (single block here since N is tiny)
    loss = focal_loss(logits, targets, gamma=2, alpha=0.25)
    jax.block_until_ready(loss)
    assert jnp.allclose(loss, ref, atol=1e-5, rtol=1e-5), (loss, ref)

    # 2) forced small tile: exercises the grid, accumulator and padded-row masking
    loss_tiled = focal_loss(logits, targets, gamma=2, alpha=0.25, tile_n=8)
    jax.block_until_ready(loss_tiled)
    assert jnp.allclose(loss_tiled, ref, atol=1e-5, rtol=1e-5), (loss_tiled, ref)

    # 3) bf16 logits fed at native width (kernel upcasts internally)
    loss_bf16 = focal_loss(logits.astype(jnp.bfloat16), targets, gamma=2, alpha=0.25)
    jax.block_until_ready(loss_bf16)
    assert jnp.allclose(loss_bf16, ref, atol=0.05, rtol=0.1), (loss_bf16, ref)

    print("KERNEL_OK")
</pallas_src>

<mosaic_0001>
module attributes {stable_mosaic.version = 11 : i64} {
  func.func @_focal_loss_kernel(%arg0: i32, %arg1: memref<20x32xf32, #tpu.memory_space<vmem>>, %arg2: memref<20x1xi32, #tpu.memory_space<vmem>>, %arg3: memref<1x1xf32, #tpu.memory_space<vmem>>) attributes {dimension_semantics = [#tpu.dimension_semantics<arbitrary>], iteration_bounds = array<i64: 1>, scalar_prefetch = 0 : i64, scratch_operands = 0 : i64, tpu.core_type = #tpu.core_type<tc>, window_params = [{transform_indices = @transform_0, window_bounds = array<i64: 20, 32>}, {transform_indices = @transform_1, window_bounds = array<i64: 20, 1>}, {pipeline_mode = #tpu.pipeline_mode<synchronous>, transform_indices = @transform_2, window_bounds = array<i64: 1, 1>}]} {
    %c0_i32 = arith.constant 0 : i32
    %0 = arith.cmpi eq, %arg0, %c0_i32 : i32
    %1 = arith.extui %0 : i1 to i32
    %c0_i32_0 = arith.constant 0 : i32
    %2 = arith.cmpi ne, %1, %c0_i32_0 : i32
    scf.if %2 {
      %cst_16 = arith.constant 0.000000e+00 : f32
      %38 = vector.broadcast %cst_16 : f32 to vector<1x1xf32>
      %c0_17 = arith.constant 0 : index
      %c0_18 = arith.constant 0 : index
      %39 = vector.load %arg3[%c0_17, %c0_18] : memref<1x1xf32, #tpu.memory_space<vmem>>, vector<1x1xf32>
      tpu.vector_store %arg3[%c0_17, %c0_18], %38 {strides = array<i32>} : memref<1x1xf32, #tpu.memory_space<vmem>>, vector<1x1xf32>,
    } else {
    }
    %c0 = arith.constant 0 : index
    %c0_1 = arith.constant 0 : index
    %3 = vector.load %arg1[%c0, %c0_1] : memref<20x32xf32, #tpu.memory_space<vmem>>, vector<20x32xf32>
    %c0_2 = arith.constant 0 : index
    %c0_3 = arith.constant 0 : index
    %4 = vector.load %arg2[%c0_2, %c0_3] : memref<20x1xi32, #tpu.memory_space<vmem>>, vector<20x1xi32>
    %cst = arith.constant dense<0xFF800000> : vector<20xf32>
    %5 = vector.multi_reduction <maximumf>, %3, %cst [1] : vector<20x32xf32> to vector<20xf32>
    %6 = vector.shape_cast %5 : vector<20xf32> to vector<20x1xf32>
    %7 = vector.broadcast %6 : vector<20x1xf32> to vector<20x32xf32>
    %8 = arith.subf %3, %7 : vector<20x32xf32>
    %9 = math.exp %8 : vector<20x32xf32>
    %cst_4 = arith.constant dense<0.000000e+00> : vector<20xf32>
    %10 = vector.multi_reduction <add>, %9, %cst_4 [1] : vector<20x32xf32> to vector<20xf32>
    %11 = vector.shape_cast %10 : vector<20xf32> to vector<20x1xf32>
    %12 = math.log %11 : vector<20x1xf32>
    %13 = arith.addf %6, %12 : vector<20x1xf32>
    %14 = tpu.iota {dimensions = array<i32: 1>} : vector<20x32xi32>
    %15 = vector.broadcast %4 : vector<20x1xi32> to vector<20x32xi32>
    %16 = arith.cmpi eq, %14, %15 : vector<20x32xi32>
    %cst_5 = arith.constant 0.000000e+00 : f32
    %17 = vector.broadcast %cst_5 : f32 to vector<20x32xf32>
    %18 = arith.select %16, %3, %17 : vector<20x32xi1>, vector<20x32xf32>
    %cst_6 = arith.constant dense<0.000000e+00> : vector<20xf32>
    %19 = vector.multi_reduction <add>, %18, %cst_6 [1] : vector<20x32xf32> to vector<20xf32>
    %20 = vector.shape_cast %19 : vector<20xf32> to vector<20x1xf32>
    %21 = arith.subf %13, %20 : vector<20x1xf32>
    %c20_i32 = arith.constant 20 : i32
    %22 = arith.muli %arg0, %c20_i32 : i32
    %23 = tpu.iota {dimensions = array<i32: 0>} : vector<20x1xi32>
    %24 = vector.broadcast %22 : i32 to vector<20x1xi32>
    %25 = arith.addi %24, %23 : vector<20x1xi32>
    %c20_i32_7 = arith.constant 20 : i32
    %26 = vector.broadcast %c20_i32_7 : i32 to vector<20x1xi32>
    %27 = arith.cmpi slt, %25, %26 : vector<20x1xi32>
    %cst_8 = arith.constant 0.000000e+00 : f32
    %28 = vector.broadcast %cst_8 : f32 to vector<20x1xf32>
    %29 = arith.select %27, %21, %28 : vector<20x1xi1>, vector<20x1xf32>
    %c0_9 = arith.constant 0 : index
    %c0_10 = arith.constant 0 : index
    %30 = vector.load %arg3[%c0_9, %c0_10] : memref<1x1xf32, #tpu.memory_space<vmem>>, vector<1x1xf32>
    %cst_11 = arith.constant dense<0.000000e+00> : vector<1xf32>
    %31 = vector.multi_reduction <add>, %29, %cst_11 [0] : vector<20x1xf32> to vector<1xf32>
    %32 = vector.shape_cast %31 : vector<1xf32> to vector<1x1xf32>
    %33 = arith.addf %30, %32 : vector<1x1xf32>
    %c0_12 = arith.constant 0 : index
    %c0_13 = arith.constant 0 : index
    %34 = vector.load %arg3[%c0_12, %c0_13] : memref<1x1xf32, #tpu.memory_space<vmem>>, vector<1x1xf32>
    tpu.vector_store %arg3[%c0_12, %c0_13], %33 {strides = array<i32>} : memref<1x1xf32, #tpu.memory_space<vmem>>, vector<1x1xf32>,
    %c0_i32_14 = arith.constant 0 : i32
    %35 = arith.cmpi eq, %arg0, %c0_i32_14 : i32
    %36 = arith.extui %35 : i1 to i32
    %c0_i32_15 = arith.constant 0 : i32
    %37 = arith.cmpi ne, %36, %c0_i32_15 : i32
    scf.if %37 {
      %c0_16 = arith.constant 0 : index
      %c0_17 = arith.constant 0 : index
      %38 = vector.load %arg3[%c0_16, %c0_17] : memref<1x1xf32, #tpu.memory_space<vmem>>, vector<1x1xf32>
      %cst_18 = arith.constant 2.000000e+01 : f32
      %39 = vector.broadcast %cst_18 : f32 to vector<1x1xf32>
      %40 = arith.divf %38, %39 : vector<1x1xf32>
      %cst_19 = arith.constant 0.000000e+00 : f32
      %41 = vector.broadcast %cst_19 : f32 to vector<1x1xf32>
      %42 = arith.subf %41, %40 : vector<1x1xf32>
      %43 = math.exp %42 : vector<1x1xf32>
      %cst_20 = arith.constant 1.000000e+00 : f32
      %44 = vector.broadcast %cst_20 : f32 to vector<1x1xf32>
      %45 = arith.subf %44, %43 : vector<1x1xf32>
      %46 = arith.mulf %45, %45 : vector<1x1xf32>
      %cst_21 = arith.constant 2.500000e-01 : f32
      %47 = vector.broadcast %cst_21 : f32 to vector<1x1xf32>
      %48 = arith.mulf %47, %46 : vector<1x1xf32>
      %49 = arith.mulf %48, %40 : vector<1x1xf32>
      %c0_22 = arith.constant 0 : index
      %c0_23 = arith.constant 0 : index
      %50 = vector.load %arg3[%c0_22, %c0_23] : memref<1x1xf32, #tpu.memory_space<vmem>>, vector<1x1xf32>
      tpu.vector_store %arg3[%c0_22, %c0_23], %49 {strides = array<i32>} : memref<1x1xf32, #tpu.memory_space<vmem>>, vector<1x1xf32>,
    } else {
    }
    return
  }
  func.func @transform_0(%arg0: i32) -> (i32, i32) {
    %c0_i32 = arith.constant 0 : i32
    %c0_i32_0 = arith.constant 0 : i32
    return %arg0, %c0_i32 : i32, i32
  }
  func.func @transform_1(%arg0: i32) -> (i32, i32) {
    %c0_i32 = arith.constant 0 : i32
    %c0_i32_0 = arith.constant 0 : i32
    return %arg0, %c0_i32 : i32, i32
  }
  func.func @transform_2(%arg0: i32) -> (i32, i32) {
    %c0_i32 = arith.constant 0 : i32
    %c0_i32_0 = arith.constant 0 : i32
    %c0_i32_1 = arith.constant 0 : i32
    return %c0_i32, %c0_i32_0 : i32, i32
  }
}

</mosaic_0001>

<llo_original>
// kernel: tpu_custom_call.1
$region0: #{tpu_custom_call.1}
  #allocation0 [shape = 'u32[]', space=smem, size = 0x4, offset = 0x4, fixed_abs, tag = 'smem constant byte address 0x4 - core index']
  #allocation1 [shape = 'u32[72,128]{1,0:T(1,128)}', space=vmem, size = 0x9000, scoped, tag = 'internal scratch']
  %s0 = inlined_call_operand.vmem [shape: f32[20,32], index: 0, kind: input, shape index: {}]
  %s1 = inlined_call_operand.vmem [shape: s32[20,1], index: 1, kind: input, shape index: {}]
  %s2 = inlined_call_operand.hbm [shape: f32[1,1], index: 2, kind: output, shape index: {}]
  %s3 = sld [smem:[#allocation0]]
  $region26: #{tpu_custom_call.1} parent=0
    _
  %s5 = ssub.s32 1, %s3
  %s6 = scalar_select 0, %s5, %s3
  $region1: #{tpu_custom_call.1} parent=0
    #allocation2 [shape = 'u8[512]{0}', space=vmem, size = 0x400, scoped, tag = 'output window, operand 0, single buffered']
    #allocation3 [shape = 's32[1]{0}', space=sflag, size = 0x4, scoped, tag = 'scoped memory for tpu_custom_call.1']
    %7 = vsyncpa [#allocation3], 0
    // Predicated region
    $region2: #{tpu_custom_call.1} parent=1 // pred_check
      _
    $region3: #{tpu_custom_call.1} parent=1 // pred_check_branch
      %9 = sbr.rel (0) target = $region5
    $region4: #{tpu_custom_call.1} parent=1 // pred_region
      _
    $region5: #{tpu_custom_call.1} parent=1 // pred_fallthru
      _
    // Predicated region
    $region6: #{tpu_custom_call.1} parent=1 // pred_check
      _
    $region7: #{tpu_custom_call.1} parent=1 // pred_check_branch
      %11 = sbr.rel (0) target = $region9
    $region8: #{tpu_custom_call.1} parent=1 // pred_region
      _
    $region9: #{tpu_custom_call.1} parent=1 // pred_fallthru
      _
    %p12 = scmp.eq.s32.totalorder 0, 0
    // Predicated region
    $region10: #{tpu_custom_call.1} parent=1 // pred_check
      %p13 = pneg %p12
    $region11: #{tpu_custom_call.1} parent=1 // pred_check_branch
      %15 = sbr.rel (%p13) target = $region13
    $region12: #{tpu_custom_call.1} parent=1 // pred_region
      %vm16 = vcmask 0
      %17 = vst.msk [vmem:[#allocation2] sm:$0x1] %vm16, 0.0
    $region13: #{tpu_custom_call.1} parent=1 // pred_fallthru
      _
    %v18 = vld [vmem:[%s0] sm:$0xff]
    %v19 = vld [vmem:[%s0 + $0x8] sm:$0xff]
    %v20 = vld [vmem:[%s0 + $0x10] sm:$0xf]
    %v21 = vld [vmem:[%s1] sm:$0xff]
    %v22 = vld [vmem:[%s1 + $0x8] sm:$0xff]
    %v23 = vld [vmem:[%s1 + $0x10] sm:$0xf]
    %vm24 = vcmask 261120
    %v25 = vsel %vm24, %v18, -inf
    %26 = vmax.xlane.f32.xlu0 %v25
    %v27 = vpop.xlane.xlu0 %26
    %v28 = vsel %vm24, %v19, -inf
    %29 = vmax.xlane.f32.xlu0 %v28
    %v30 = vpop.xlane.xlu0 %29
    %vm31 = vcmask 257024
    %v32 = vsel %vm31, %v20, -inf
    %33 = vmax.xlane.f32.xlu0 %v32
    %v34 = vpop.xlane.xlu0 %33
    %v35 = vsub.f32 %v18, %v27
    %v36 = vsub.f32 %v19, %v30
    %v37 = vsub.f32 %v20, %v34
    %v38 = vmul.f32 %v35, 1.442695
    %v39 = vpow.pop %v38
    %v40 = vmul.f32 %v36, 1.442695
    %v41 = vpow.pop %v40
    %v42 = vmul.f32 %v37, 1.442695
    %v43 = vpow.pop %v42
    %v44 = vsel %vm24, %v39, 0.0
    %45 = vadd.xlane.f32.xlu0 %v44
    %v46 = vpop.xlane.xlu0 %45
    %v47 = vsel %vm24, %v41, 0.0
    %48 = vadd.xlane.f32.xlu0 %v47
    %v49 = vpop.xlane.xlu0 %48
    %v50 = vsel %vm31, %v43, 0.0
    %51 = vadd.xlane.f32.xlu0 %v50
    %v52 = vpop.xlane.xlu0 %51
    %v53 = vlog2.pop %v46
    %v54 = vmul.f32 %v53, 0.6931472
    %v55 = vlog2.pop %v49
    %v56 = vmul.f32 %v55, 0.6931472
    %v57 = vlog2.pop %v52
    %v58 = vmul.f32 %v57, 0.6931472
    %v59 = vadd.f32 %v27, %v54
    %v60 = vadd.f32 %v30, %v56
    %v61 = vadd.f32 %v34, %v58
    %v62 = vlaneseq
    %v63 = vand.u32 %v62, 127
    %64 = vset.pattern.permute.xlu0 0
    %65 = vperm.xlu0 %64, %v21
    %v66 = vpop.permute.xlu0 %65
    %67 = vset.pattern.permute.xlu0 0
    %68 = vperm.xlu0 %67, %v22
    %v69 = vpop.permute.xlu0 %68
    %70 = vset.pattern.permute.xlu0 0
    %71 = vperm.xlu0 %70, %v23
    %v72 = vpop.permute.xlu0 %71
    %vm73 = vcmp.eq.s32.totalorder %v63, %v66
    %vm74 = vcmp.eq.s32.totalorder %v63, %v69
    %vm75 = vcmp.eq.s32.totalorder %v63, %v72
    %v76 = vsel %vm73, %v18, 0.0
    %v77 = vsel %vm74, %v19, 0.0
    %v78 = vsel %vm75, %v20, 0.0
    %v79 = vsel %vm24, %v76, 0.0
    %80 = vadd.xlane.f32.xlu0 %v79
    %v81 = vpop.xlane.xlu0 %80
    %v82 = vsel %vm24, %v77, 0.0
    %83 = vadd.xlane.f32.xlu0 %v82
    %v84 = vpop.xlane.xlu0 %83
    %v85 = vsel %vm31, %v78, 0.0
    %86 = vadd.xlane.f32.xlu0 %v85
    %v87 = vpop.xlane.xlu0 %86
    %v88 = vsub.f32 %v59, %v81
    %v89 = vsub.f32 %v60, %v84
    %v90 = vsub.f32 %v61, %v87
    %s91 = smul.u32 0, 20
    %v92 = vlaneseq
    %v93 = vshrl.u32 %v92, 7
    %v94 = vadd.s32 %v93, 8
    %v95 = vadd.s32 %v93, 16
    %v96 = vstv %s91
    %v97 = vadd.s32 %v96, %v93
    %v98 = vadd.s32 %v96, %v94
    %v99 = vadd.s32 %v96, %v95
    %vm100 = vcmp.lt.s32.totalorder %v97, 20
    %vm101 = vcmp.lt.s32.totalorder %v98, 20
    %vm102 = vcmp.lt.s32.totalorder %v99, 20
    %v103 = vsel %vm100, %v88, 0.0
    %v104 = vsel %vm101, %v89, 0.0
    %v105 = vsel %vm102, %v90, 0.0
    %v106 = vld [vmem:[#allocation2] sm:$0x1]
    %v107 = vadd.f32 %v103, %v104
    %vm108 = vcmask 1043456
    %v109 = vsel %vm108, %v105, 0.0
    %v110 = vadd.f32 %v107, %v109
    %v111 = vrot.slane %v110, 4
    %v112 = vadd.f32 %v110, %v111
    %v113 = vrot.slane %v112, 2
    %v114 = vadd.f32 %v112, %v113
    %v115 = vrot.slane %v114, 1
    %v116 = vadd.f32 %v114, %v115
    %v117 = vadd.f32 %v106, %v116
    %vm118 = vcmask 0
    %119 = vst.msk [vmem:[#allocation2] sm:$0x1] %vm118, %v117
    // Predicated region
    $region14: #{tpu_custom_call.1} parent=1 // pred_check
      %p120 = pneg %p12
    $region15: #{tpu_custom_call.1} parent=1 // pred_check_branch
      %122 = sbr.rel (%p120) target = $region17
    $region16: #{tpu_custom_call.1} parent=1 // pred_region
      %v123 = vld [vmem:[#allocation2] sm:$0x1]
      %v124 = vrcp.pop 20.0
      %v125 = vmul.f32 20.0, %v124
      %v126 = vsub.f32 1.0, %v125
      %v127 = vmul.f32 %v124, %v126
      %v128 = vadd.f32 %v124, %v127
      %vm129 = vweird.f32 %v124
      %v130 = vsel %vm129, %v124, %v128
      %v131 = vmul.f32 %v123, %v130
      %v132 = vsub.f32 0.0, %v131
      %v133 = vmul.f32 %v132, 1.442695
      %v134 = vpow.pop %v133
      %v135 = vsub.f32 1.0, %v134
      %v136 = vmul.f32 %v135, %v135
      %v137 = vmul.f32 %v136, 0.25
      %v138 = vmul.f32 %v137, %v131
      %139 = vst.msk [vmem:[#allocation2] sm:$0x1] %vm118, %v138
    $region17: #{tpu_custom_call.1} parent=1 // pred_fallthru
      _
    // Predicated region
    $region18: #{tpu_custom_call.1} parent=1 // pred_check
      _
    $region19: #{tpu_custom_call.1} parent=1 // pred_check_branch
      %141 = sbr.rel (0) target = $region21
    $region20: #{tpu_custom_call.1} parent=1 // pred_region
      %143 = vsyncadd [#allocation3], 0
      %s145 = sshll.u32 [#allocation2], 4
      %s146 = int_to_ptr.vmem [resolvable:$true] %s145
      %s147 = sshll.u32 %s2, 4
      %s148 = int_to_ptr.hbm [resolvable:$true] %s147
      %150 = dma.vmem_to_hbm [thread:$0]  %s146, 16, %s148, [#allocation3]
    $region21: #{tpu_custom_call.1} parent=1 // pred_fallthru
      _
    // Predicated region
    $region22: #{tpu_custom_call.1} parent=1 // pred_check
      _
    $region23: #{tpu_custom_call.1} parent=1 // pred_check_branch
      %152 = sbr.rel (0) target = $region25
    $region24: #{tpu_custom_call.1} parent=1 // pred_region
      %154 = dma.done [#allocation3], 16
    $region25: #{tpu_custom_call.1} parent=1 // pred_fallthru
      _
    %155 = vsyncpa [#allocation3], 1

</llo_original>
